<compile_context>
chip_gen: v7x
topology: tpu7x:2x2x1
jax: 0.10.0
libtpu: 0.0.40
codegen_flags: <defaults>
</compile_context>

<pallas_src>
import functools

import jax
import jax.numpy as jnp
from jax.experimental import pallas as pl
from jax.experimental.pallas import tpu as pltpu

# Matmul operand dtype. Set to jnp.bfloat16 on v6e/v7x for ~2x MXU throughput
# and half the weight DMA / VMEM footprint (accumulation stays f32 via
# preferred_element_type; cell state / LSE / score accumulators stay f32).
# Kept f32 here so the rtol=1e-4 check against the f32 reference holds.
MATMUL_DTYPE = jnp.float32


def _round_up(x, m):
    return (x + m - 1) // m * m


def _pad_lstm_w(w, H, Hp, pad_in_to=None):
    """w: (4H, In) PyTorch gate layout [i|f|g|o]. Pad each gate's rows H->Hp
    (and optionally the input dim) with zeros. Exact: padded units stay 0."""
    In = w.shape[1]
    w4 = jnp.pad(w.reshape(4, H, In), ((0, 0), (0, Hp - H), (0, 0)))
    w = w4.reshape(4 * Hp, In)
    if pad_in_to is not None:
        w = jnp.pad(w, ((0, 0), (0, pad_in_to - In)))
    return w


def _pad_lstm_b(b, H, Hp):
    """b: (4H,) -> (1, 4Hp) with per-gate zero padding."""
    return jnp.pad(b.reshape(4, H), ((0, 0), (0, Hp - H))).reshape(1, 4 * Hp)


# -----------------------------------------------------------------------------
# Kernel 1: tiled matmul + bias  (time-batched layer-0 input-gate projection)
# -----------------------------------------------------------------------------
def _matmul_bias_kernel(x_ref, w_ref, b_ref, o_ref):
    o_ref[...] = (
        jnp.dot(x_ref[...], w_ref[...], preferred_element_type=jnp.float32)
        + b_ref[...]
    ).astype(o_ref.dtype)


def matmul_bias(x, w, b, tile_m):
    """x: (M, K) with M % tile_m == 0, w: (K, N), b: (1, N) -> (M, N) f32."""
    M, K = x.shape
    N = w.shape[1]
    return pl.pallas_call(
        _matmul_bias_kernel,
        out_shape=jax.ShapeDtypeStruct((M, N), jnp.float32),
        grid_spec=pltpu.PrefetchScalarGridSpec(
            num_scalar_prefetch=0,
            grid=(M // tile_m,),
            in_specs=[
                pl.BlockSpec((tile_m, K), lambda i: (i, 0)),
                pl.BlockSpec((K, N), lambda i: (0, 0)),
                pl.BlockSpec((1, N), lambda i: (0, 0)),
            ],
            out_specs=pl.BlockSpec((tile_m, N), lambda i: (i, 0)),
        ),
        compiler_params=pltpu.CompilerParams(
            dimension_semantics=("parallel",)),
    )(x, w, b)


# -----------------------------------------------------------------------------
# Kernel 2: fused 3-layer LSTM recurrence.
#   Grid = time chunks; inside each grid step a lax.fori_loop walks the chunk.
#   Layer-0 input gates are precomputed (Stage 1); only h @ W_hh (+ the small
#   layer-(1,2) input matmuls) sit on the serial critical path.
# -----------------------------------------------------------------------------
def _lstm_stack_kernel(g0_ref, len_ref, wih_ref, whh_ref, b_ref, y_ref,
                       h_sc, c_sc):
    chunk = pl.program_id(0)
    tc = g0_ref.shape[0]
    n_layers = h_sc.shape[0]
    Hp = h_sc.shape[2]

    @pl.when(chunk == 0)
    def _():
        h_sc[...] = jnp.zeros_like(h_sc)
        c_sc[...] = jnp.zeros_like(c_sc)

    lengths = len_ref[...]                      # (Bp, 1) int32, loaded once
    t0 = chunk * tc

    def step(lt, carry):
        t = t0 + lt
        active = t < lengths                    # (Bp, 1) bool
        inp_gates = g0_ref[lt]                  # (Bp, 4Hp): X@Wih0 + b0 (precomputed)
        layer_in = None
        for l in range(n_layers):               # static unroll over layers
            h_prev = h_sc[l]
            c_prev = c_sc[l]
            rec = jnp.dot(h_prev.astype(whh_ref.dtype), whh_ref[l],
                          preferred_element_type=jnp.float32)
            if l == 0:
                gates = inp_gates + rec
            else:
                gates = (jnp.dot(layer_in.astype(wih_ref.dtype), wih_ref[l - 1],
                                 preferred_element_type=jnp.float32)
                         + rec + b_ref[l - 1])
            # gate slices are 128-lane aligned because Hp % 128 == 0
            i = jax.nn.sigmoid(gates[:, 0 * Hp:1 * Hp])
            f = jax.nn.sigmoid(gates[:, 1 * Hp:2 * Hp])
            g = jnp.tanh(gates[:, 2 * Hp:3 * Hp])
            o = jax.nn.sigmoid(gates[:, 3 * Hp:4 * Hp])
            c_new = f * c_prev + i * g
            h_new = o * jnp.tanh(c_new)
            # pack_padded_sequence semantics: freeze state / zero output past len
            h_sc[l] = jnp.where(active, h_new, h_prev)
            c_sc[l] = jnp.where(active, c_new, c_prev)
            layer_in = jnp.where(active, h_new, 0.0)
        y_ref[lt] = layer_in.astype(y_ref.dtype)
        return carry

    jax.lax.fori_loop(0, tc, step, 0, unroll=tc <= 16)


def lstm_stack(g0, lengths2d, wih_t, whh_t, b_rest, time_chunk):
    T_pad, Bp, fourHp = g0.shape
    Hp = fourHp // 4
    nl = whh_t.shape[0]
    return pl.pallas_call(
        _lstm_stack_kernel,
        out_shape=jax.ShapeDtypeStruct((T_pad, Bp, Hp), jnp.float32),
        grid_spec=pltpu.PrefetchScalarGridSpec(
            num_scalar_prefetch=0,
            grid=(T_pad // time_chunk,),
            in_specs=[
                pl.BlockSpec((time_chunk, Bp, fourHp), lambda c: (c, 0, 0)),
                pl.BlockSpec((Bp, 1), lambda c: (0, 0)),
                pl.BlockSpec((nl - 1, Hp, fourHp), lambda c: (0, 0, 0)),
                pl.BlockSpec((nl, Hp, fourHp), lambda c: (0, 0, 0)),
                pl.BlockSpec((nl - 1, 1, fourHp), lambda c: (0, 0, 0)),
            ],
            out_specs=pl.BlockSpec((time_chunk, Bp, Hp), lambda c: (c, 0, 0)),
            scratch_shapes=[pltpu.VMEM((nl, Bp, Hp), jnp.float32),
                            pltpu.VMEM((nl, Bp, Hp), jnp.float32)],
        ),
        compiler_params=pltpu.CompilerParams(
            dimension_semantics=("arbitrary",)),   # serial recurrence over time
    )(g0, lengths2d, wih_t, whh_t, b_rest)


# -----------------------------------------------------------------------------
# Kernel 3: blocked vocab projection + online log-softmax + gold gather + mask.
#   Grid = (row tiles [parallel], vocab tiles [arbitrary]); online logsumexp
#   accumulates across vocab tiles; the gold logit is gathered inside whichever
#   vocab tile contains the target column. No (B, V) logits materialized, no
#   full (H, V) weight resident (v7x-safe).
# -----------------------------------------------------------------------------
def _proj_loss_kernel(vocab_size, pad_id, vals_ref, tgt_ref, w_ref, out_ref,
                      m_sc, s_sc, gold_sc):
    vi = pl.program_id(1)

    @pl.when(vi == 0)
    def _():
        m_sc[...] = jnp.full(m_sc.shape, -1e30, jnp.float32)
        s_sc[...] = jnp.zeros_like(s_sc)
        gold_sc[...] = jnp.zeros_like(gold_sc)

    logits = jnp.dot(vals_ref[...], w_ref[...],
                     preferred_element_type=jnp.float32)        # (TM, TV)
    tm, tv = logits.shape
    col = jax.lax.broadcasted_iota(jnp.int32, (tm, tv), 1) + vi * tv
    logits = jnp.where(col < vocab_size, logits, -1e30)         # mask pad vocab cols

    # online logsumexp over vocab tiles
    m_prev = m_sc[...]
    m_new = jnp.maximum(m_prev, jnp.max(logits, axis=-1, keepdims=True))
    s_sc[...] = (s_sc[...] * jnp.exp(m_prev - m_new)
                 + jnp.sum(jnp.exp(logits - m_new), axis=-1, keepdims=True))
    m_sc[...] = m_new

    # gather the gold logit if its column lives in this vocab tile
    tgt = tgt_ref[...]                                          # (TM, 1) int32
    gold_sc[...] = gold_sc[...] + jnp.sum(
        jnp.where(col == tgt, logits, 0.0), axis=-1, keepdims=True)

    @pl.when(vi == pl.num_programs(1) - 1)
    def _():
        logp_gold = gold_sc[...] - (m_sc[...] + jnp.log(s_sc[...]))
        mask = (tgt != pad_id).astype(jnp.float32)
        out_ref[...] = logp_gold * mask


def projection_loss(vals2d, tgt2d, wproj_t, vocab_size, pad_id, tile_m, tile_v):
    M_pad, Hp = vals2d.shape
    V_pad = wproj_t.shape[1]
    return pl.pallas_call(
        functools.partial(_proj_loss_kernel, vocab_size, pad_id),
        out_shape=jax.ShapeDtypeStruct((M_pad, 1), jnp.float32),
        grid_spec=pltpu.PrefetchScalarGridSpec(
            num_scalar_prefetch=0,
            grid=(M_pad // tile_m, V_pad // tile_v),
            in_specs=[
                pl.BlockSpec((tile_m, Hp), lambda r, v: (r, 0)),
                pl.BlockSpec((tile_m, 1), lambda r, v: (r, 0)),
                pl.BlockSpec((Hp, tile_v), lambda r, v: (0, v)),
            ],
            out_specs=pl.BlockSpec((tile_m, 1), lambda r, v: (r, 0)),
            scratch_shapes=[pltpu.VMEM((tile_m, 1), jnp.float32),
                            pltpu.VMEM((tile_m, 1), jnp.float32),
                            pltpu.VMEM((tile_m, 1), jnp.float32)],
        ),
        compiler_params=pltpu.CompilerParams(
            dimension_semantics=("parallel", "arbitrary")),
    )(vals2d, tgt2d, wproj_t)


# -----------------------------------------------------------------------------
# LM forward (Pallas): embedding glue + stage 1/2/3 kernels.
# -----------------------------------------------------------------------------
def lm_forward_pallas(params, source_padded, target_padded, source_lengths):
    pad_id = params["pad_id"]
    emb = params["embedding"]
    T, B = source_padded.shape
    E = emb.shape[1]
    H = params["lstm"][0]["w_hh"].shape[1]
    V = params["w_proj"].shape[0]

    Hp = _round_up(H, 128)            # lane-aligned gate blocks (i|f|g|o each Hp)
    Bp = _round_up(B, 8)              # sublane-aligned batch
    time_chunk = T if T <= 64 else 64
    T_pad = _round_up(T, time_chunk)

    # ---- pack / zero-pad weights (exact: padded hidden units stay at 0) ----
    l0 = params["lstm"][0]
    wih0_t = jnp.transpose(_pad_lstm_w(l0["w_ih"], H, Hp)).astype(MATMUL_DTYPE)    # (E,4Hp)
    b0 = _pad_lstm_b(l0["b_ih"] + l0["b_hh"], H, Hp)                                # (1,4Hp)
    whh_t = jnp.stack([
        jnp.transpose(_pad_lstm_w(l["w_hh"], H, Hp, pad_in_to=Hp)).astype(MATMUL_DTYPE)
        for l in params["lstm"]])                                                   # (3,Hp,4Hp)
    wih_t = jnp.stack([
        jnp.transpose(_pad_lstm_w(l["w_ih"], H, Hp, pad_in_to=Hp)).astype(MATMUL_DTYPE)
        for l in params["lstm"][1:]])                                               # (2,Hp,4Hp)
    b_rest = jnp.stack([_pad_lstm_b(l["b_ih"] + l["b_hh"], H, Hp)
                        for l in params["lstm"][1:]])                               # (2,1,4Hp)

    # ---- embedding lookup (glue) + batch/time padding ----
    X = jnp.take(emb, source_padded, axis=0)                     # (T, B, E)
    X = jnp.pad(X, ((0, T_pad - T), (0, Bp - B), (0, 0)))
    lengths2d = jnp.pad(source_lengths.astype(jnp.int32),
                        (0, Bp - B)).reshape(Bp, 1)

    # ---- Stage 1: time-batched layer-0 input-gate projection (big MXU matmul)
    M = T_pad * Bp
    tile_m = 128
    M_pad = _round_up(M, tile_m)
    x2d = jnp.pad(X.reshape(M, E), ((0, M_pad - M), (0, 0))).astype(MATMUL_DTYPE)
    g0 = matmul_bias(x2d, wih0_t, b0, tile_m)[:M].reshape(T_pad, Bp, 4 * Hp)

    # ---- Stage 2: fused 3-layer recurrence (single pallas_call, in-kernel loop)
    y = lstm_stack(g0, lengths2d, wih_t, whh_t, b_rest, time_chunk)  # (T_pad,Bp,Hp)

    # ---- Stage 3: blocked vocab projection + online log-softmax + gold gather
    tile_v = min(512, _round_up(V, 128))
    V_pad = _round_up(V, tile_v)
    wproj_t = jnp.pad(jnp.transpose(params["w_proj"]),
                      ((0, Hp - H), (0, V_pad - V))).astype(MATMUL_DTYPE)   # (Hp,V_pad)
    vals2d = jnp.pad(y.reshape(M, Hp), ((0, M_pad - M), (0, 0))).astype(MATMUL_DTYPE)
    tgt = jnp.pad(target_padded.astype(jnp.int32),
                  ((0, T_pad - T), (0, Bp - B)), constant_values=pad_id)
    tgt2d = jnp.pad(tgt.reshape(M, 1), ((0, M_pad - M), (0, 0)),
                    constant_values=pad_id)

    per_row = projection_loss(vals2d, tgt2d, wproj_t, V, pad_id, tile_m, tile_v)
    scores = per_row[:M, 0].reshape(T_pad, Bp).sum(axis=0)[:B]   # tiny glue reduction
    return scores


# -----------------------------------------------------------------------------
# Pure-JAX reference (same semantics) for correctness checking.
# -----------------------------------------------------------------------------
def lm_forward_ref(params, source_padded, target_padded, source_lengths):
    X = jnp.take(params["embedding"], source_padded, axis=0)
    T, B, _ = X.shape
    h_in = X
    for layer in params["lstm"]:
        H = layer["w_hh"].shape[1]
        h = jnp.zeros((B, H), jnp.float32)
        c = jnp.zeros((B, H), jnp.float32)
        ys = []
        for t in range(T):
            gates = (h_in[t] @ layer["w_ih"].T + h @ layer["w_hh"].T
                     + layer["b_ih"] + layer["b_hh"])
            i, f, g, o = jnp.split(gates, 4, axis=-1)
            i, f, o = jax.nn.sigmoid(i), jax.nn.sigmoid(f), jax.nn.sigmoid(o)
            g = jnp.tanh(g)
            c_new = f * c + i * g
            h_new = o * jnp.tanh(c_new)
            active = (t < source_lengths)[:, None]
            h = jnp.where(active, h_new, h)
            c = jnp.where(active, c_new, c)
            ys.append(jnp.where(active, h_new, 0.0))
        h_in = jnp.stack(ys, axis=0)
    logits = h_in @ params["w_proj"].T
    logp = jax.nn.log_softmax(logits, axis=-1)
    gold = jnp.take_along_axis(logp, target_padded[..., None], axis=-1)[..., 0]
    mask = (target_padded != params["pad_id"]).astype(jnp.float32)
    return (gold * mask).sum(axis=0)


# -----------------------------------------------------------------------------
# Deterministic parameter init (mirrors nn.Embedding / nn.LSTM / nn.Linear)
# -----------------------------------------------------------------------------
def init_params(key, vocab_size, embed_size, hidden_size, num_layers, pad_id):
    keys = jax.random.split(key, 2 + 4 * num_layers)
    emb = jax.random.normal(keys[0], (vocab_size, embed_size), jnp.float32)
    emb = emb.at[pad_id].set(0.0)                       # padding_idx row = 0
    k = 1.0 / jnp.sqrt(hidden_size)
    lstm = []
    for l in range(num_layers):
        in_size = embed_size if l == 0 else hidden_size
        base = 2 + 4 * l
        lstm.append(dict(
            w_ih=jax.random.uniform(keys[base + 0], (4 * hidden_size, in_size),
                                    jnp.float32, -k, k),
            w_hh=jax.random.uniform(keys[base + 1], (4 * hidden_size, hidden_size),
                                    jnp.float32, -k, k),
            b_ih=jax.random.uniform(keys[base + 2], (4 * hidden_size,),
                                    jnp.float32, -k, k),
            b_hh=jax.random.uniform(keys[base + 3], (4 * hidden_size,),
                                    jnp.float32, -k, k),
        ))
    w_proj = jax.random.uniform(keys[1], (vocab_size, hidden_size),
                                jnp.float32, -k, k)     # Linear, bias=False
    return dict(embedding=emb, lstm=lstm, w_proj=w_proj, pad_id=pad_id)


if __name__ == "__main__":
    # Small shapes implied by the module: seq T=8, batch B=2, embed=32,
    # hidden=32, vocab=16, 3 LSTM layers, pad token id = 0.
    T, B, E, H, V = 8, 2, 32, 32, 16
    PAD_ID = 0

    key = jax.random.PRNGKey(0)
    kp, ks, kt = jax.random.split(key, 3)
    params = init_params(kp, V, E, H, num_layers=3, pad_id=PAD_ID)

    # Synthetic tokenized source / target (stand-in for vocab.to_input_tensor).
    source_lengths = jnp.array([8, 6], dtype=jnp.int32)       # sorted descending
    src = jax.random.randint(ks, (T, B), 1, V, dtype=jnp.int32)
    tgt = jax.random.randint(kt, (T, B), 1, V, dtype=jnp.int32)
    t_idx = jnp.arange(T, dtype=jnp.int32)[:, None]
    pad_mask = t_idx >= source_lengths[None, :]
    source_padded = jnp.where(pad_mask, PAD_ID, src)
    target_padded = jnp.where(pad_mask, PAD_ID, tgt)

    scores = lm_forward_pallas(params, source_padded, target_padded, source_lengths)
    scores = jax.block_until_ready(scores)

    ref = lm_forward_ref(params, source_padded, target_padded, source_lengths)
    assert scores.shape == (B,)
    assert jnp.allclose(scores, ref, rtol=1e-4, atol=1e-4), (scores, ref)

    print("KERNEL_OK")
</pallas_src>

<mosaic_0001>
module attributes {stable_mosaic.version = 11 : i64} {
  func.func @_matmul_bias_kernel(%arg0: i32, %arg1: memref<128x32xf32, #tpu.memory_space<vmem>>, %arg2: memref<32x512xf32, #tpu.memory_space<vmem>>, %arg3: memref<1x512xf32, #tpu.memory_space<vmem>>, %arg4: memref<128x512xf32, #tpu.memory_space<vmem>>) attributes {dimension_semantics = [#tpu.dimension_semantics<parallel>], iteration_bounds = array<i64: 1>, scalar_prefetch = 0 : i64, scratch_operands = 0 : i64, tpu.core_type = #tpu.core_type<tc>, window_params = [{transform_indices = @transform_0, window_bounds = array<i64: 128, 32>}, {pipeline_mode = #tpu.pipeline_mode<synchronous>, transform_indices = @transform_1, window_bounds = array<i64: 32, 512>}, {pipeline_mode = #tpu.pipeline_mode<synchronous>, transform_indices = @transform_2, window_bounds = array<i64: 1, 512>}, {transform_indices = @transform_3, window_bounds = array<i64: 128, 512>}]} {
    %c0 = arith.constant 0 : index
    %c0_0 = arith.constant 0 : index
    %0 = vector.load %arg1[%c0, %c0_0] : memref<128x32xf32, #tpu.memory_space<vmem>>, vector<128x32xf32>
    %c0_1 = arith.constant 0 : index
    %c0_2 = arith.constant 0 : index
    %1 = vector.load %arg2[%c0_1, %c0_2] : memref<32x512xf32, #tpu.memory_space<vmem>>, vector<32x512xf32>
    %cst = arith.constant dense<0.000000e+00> : vector<128x512xf32>
    %2 = tpu.matmul %0, %1, %cst {dimension_numbers = #tpu.dot_dimension_numbers<[1], [0], [0], [1], [0, 0, 1, 1], [], []>} : vector<128x32xf32>, vector<32x512xf32>, vector<128x512xf32> -> vector<128x512xf32>
    %c0_3 = arith.constant 0 : index
    %c0_4 = arith.constant 0 : index
    %3 = vector.load %arg3[%c0_3, %c0_4] : memref<1x512xf32, #tpu.memory_space<vmem>>, vector<1x512xf32>
    %4 = vector.broadcast %3 : vector<1x512xf32> to vector<128x512xf32>
    %5 = arith.addf %2, %4 : vector<128x512xf32>
    %c0_5 = arith.constant 0 : index
    %c0_6 = arith.constant 0 : index
    %6 = vector.load %arg4[%c0_5, %c0_6] : memref<128x512xf32, #tpu.memory_space<vmem>>, vector<128x512xf32>
    tpu.vector_store %arg4[%c0_5, %c0_6], %5 {strides = array<i32>} : memref<128x512xf32, #tpu.memory_space<vmem>>, vector<128x512xf32>,
    return
  }
  func.func @transform_0(%arg0: i32) -> (i32, i32) {
    %c0_i32 = arith.constant 0 : i32
    %c0_i32_0 = arith.constant 0 : i32
    return %arg0, %c0_i32 : i32, i32
  }
  func.func @transform_1(%arg0: i32) -> (i32, i32) {
    %c0_i32 = arith.constant 0 : i32
    %c0_i32_0 = arith.constant 0 : i32
    %c0_i32_1 = arith.constant 0 : i32
    return %c0_i32, %c0_i32_0 : i32, i32
  }
  func.func @transform_2(%arg0: i32) -> (i32, i32) {
    %c0_i32 = arith.constant 0 : i32
    %c0_i32_0 = arith.constant 0 : i32
    %c0_i32_1 = arith.constant 0 : i32
    return %c0_i32, %c0_i32_0 : i32, i32
  }
  func.func @transform_3(%arg0: i32) -> (i32, i32) {
    %c0_i32 = arith.constant 0 : i32
    %c0_i32_0 = arith.constant 0 : i32
    return %arg0, %c0_i32 : i32, i32
  }
}

</mosaic_0001>

<llo_original>
// kernel: tpu_custom_call.1
$region0: #{tpu_custom_call.1}
  #allocation0 [shape = 'u32[]', space=smem, size = 0x4, offset = 0x4, fixed_abs, tag = 'smem constant byte address 0x4 - core index']
  #allocation1 [shape = 'u32[144,128]{1,0:T(1,128)}', space=vmem, size = 0x12000, scoped, tag = 'internal scratch']
  %s0 = inlined_call_operand.vmem [shape: f32[128,32], index: 0, kind: input, shape index: {}]
  %s1 = inlined_call_operand.vmem [shape: f32[32,512], index: 1, kind: input, shape index: {}]
  %s2 = inlined_call_operand.vmem [shape: f32[1,512], index: 2, kind: input, shape index: {}]
  %s3 = inlined_call_operand.hbm [shape: f32[128,512], index: 3, kind: output, shape index: {}]
  %s4 = sld [smem:[#allocation0]]
  $region22: #{tpu_custom_call.1} parent=0
    _
  %s6 = ssub.s32 1, %s4
  %s7 = scalar_select 0, %s6, %s4
  $region1: #{tpu_custom_call.1} parent=0
    #allocation2 [shape = 'u8[262144]{0}', space=vmem, size = 0x40000, scoped, tag = 'output window, operand 0, single buffered']
    #allocation3 [shape = 's32[1]{0}', space=sflag, size = 0x4, scoped, tag = 'scoped memory for tpu_custom_call.1']
    %8 = vsyncpa [#allocation3], 0
    // Predicated region
    $region2: #{tpu_custom_call.1} parent=1 // pred_check
      _
    $region3: #{tpu_custom_call.1} parent=1 // pred_check_branch
      %10 = sbr.rel (0) target = $region5
    $region4: #{tpu_custom_call.1} parent=1 // pred_region
      _
    $region5: #{tpu_custom_call.1} parent=1 // pred_fallthru
      _
    // Predicated region
    $region6: #{tpu_custom_call.1} parent=1 // pred_check
      _
    $region7: #{tpu_custom_call.1} parent=1 // pred_check_branch
      %12 = sbr.rel (0) target = $region9
    $region8: #{tpu_custom_call.1} parent=1 // pred_region
      _
    $region9: #{tpu_custom_call.1} parent=1 // pred_fallthru
      _
    // Predicated region
    $region10: #{tpu_custom_call.1} parent=1 // pred_check
      _
    $region11: #{tpu_custom_call.1} parent=1 // pred_check_branch
      %14 = sbr.rel (0) target = $region13
    $region12: #{tpu_custom_call.1} parent=1 // pred_region
      _
    $region13: #{tpu_custom_call.1} parent=1 // pred_fallthru
      _
    %v15 = vld [vmem:[%s0] sm:$0xff]
    %v16 = vld [vmem:[%s0 + $0x8] sm:$0xff]
    %v17 = vld [vmem:[%s0 + $0x10] sm:$0xff]
    %v18 = vld [vmem:[%s0 + $0x18] sm:$0xff]
    %v19 = vld [vmem:[%s0 + $0x20] sm:$0xff]
    %v20 = vld [vmem:[%s0 + $0x28] sm:$0xff]
    %v21 = vld [vmem:[%s0 + $0x30] sm:$0xff]
    %v22 = vld [vmem:[%s0 + $0x38] sm:$0xff]
    %v23 = vld [vmem:[%s0 + $0x40] sm:$0xff]
    %v24 = vld [vmem:[%s0 + $0x48] sm:$0xff]
    %v25 = vld [vmem:[%s0 + $0x50] sm:$0xff]
    %v26 = vld [vmem:[%s0 + $0x58] sm:$0xff]
    %v27 = vld [vmem:[%s0 + $0x60] sm:$0xff]
    %v28 = vld [vmem:[%s0 + $0x68] sm:$0xff]
    %v29 = vld [vmem:[%s0 + $0x70] sm:$0xff]
    %v30 = vld [vmem:[%s0 + $0x78] sm:$0xff]
    %v31 = vld [vmem:[%s1] sm:$0xff]
    %v32 = vld [vmem:[%s1 + $0x8] sm:$0xff]
    %v33 = vld [vmem:[%s1 + $0x10] sm:$0xff]
    %v34 = vld [vmem:[%s1 + $0x18] sm:$0xff]
    %v35 = vld [vmem:[%s1 + $0x20] sm:$0xff]
    %v36 = vld [vmem:[%s1 + $0x28] sm:$0xff]
    %v37 = vld [vmem:[%s1 + $0x30] sm:$0xff]
    %v38 = vld [vmem:[%s1 + $0x38] sm:$0xff]
    %v39 = vld [vmem:[%s1 + $0x40] sm:$0xff]
    %v40 = vld [vmem:[%s1 + $0x48] sm:$0xff]
    %v41 = vld [vmem:[%s1 + $0x50] sm:$0xff]
    %v42 = vld [vmem:[%s1 + $0x58] sm:$0xff]
    %v43 = vld [vmem:[%s1 + $0x60] sm:$0xff]
    %v44 = vld [vmem:[%s1 + $0x68] sm:$0xff]
    %v45 = vld [vmem:[%s1 + $0x70] sm:$0xff]
    %v46 = vld [vmem:[%s1 + $0x78] sm:$0xff]
    %v47 = vld [vmem:[%s2] sm:$0xf]
    %v49 = vlaneseq
    %v50 = vshrl.u32 %v49, 7
    %v51 = vsub.s32 0, %v50
    %v52 = vrot.slane %v47, %v51
    %v53 = vlaneseq
    %v54 = vshrl.u32 %v53, 7
    %v55 = vsub.s32 1, %v54
    %v56 = vrot.slane %v47, %v55
    %v57 = vlaneseq
    %v58 = vshrl.u32 %v57, 7
    %v59 = vsub.s32 2, %v58
    %v60 = vrot.slane %v47, %v59
    %v61 = vlaneseq
    %v62 = vshrl.u32 %v61, 7
    %v63 = vsub.s32 3, %v62
    %v64 = vrot.slane %v47, %v63
    %vm69 = vcmask 261120
    %v71 = vsel %vm69, %v15, 0
    %v74 = vsel %vm69, %v16, 0
    %v77 = vsel %vm69, %v17, 0
    %v80 = vsel %vm69, %v18, 0
    %v83 = vsel %vm69, %v19, 0
    %v86 = vsel %vm69, %v20, 0
    %v89 = vsel %vm69, %v21, 0
    %v92 = vsel %vm69, %v22, 0
    %v95 = vsel %vm69, %v23, 0
    %v98 = vsel %vm69, %v24, 0
    %v101 = vsel %vm69, %v25, 0
    %v104 = vsel %vm69, %v26, 0
    %v107 = vsel %vm69, %v27, 0
    %v110 = vsel %vm69, %v28, 0
    %v113 = vsel %vm69, %v29, 0
    %v116 = vsel %vm69, %v30, 0
    %118 = vmatprep.subr.mxu0 %v32
    %119 = vmatpush1.msra.mxu0 %v31
    %120 = vmatprep.subr.mxu0 %v36
    %121 = vmatpush1.msra.mxu0 %v35
    %122 = vmatprep.subr.mxu0 %v40
    %123 = vmatpush1.msra.mxu0 %v39
    %124 = vmatprep.subr.mxu0 %v44
    %125 = vmatpush1.msra.mxu0 %v43
    %126 = vmatprep.subr.mxu0 0.0
    %127 = vmatpush1.msra.mxu0 0.0
    %128 = vmatprep.subr.mxu0 0.0
    %129 = vmatpush1.msra.mxu0 0.0
    %130 = vmatprep.subr.mxu0 0.0
    %131 = vmatpush1.msra.mxu0 0.0
    %132 = vmatprep.subr.mxu0 0.0
    %133 = vmatpush1.msra.mxu0 0.0
    %134 = vmatprep.subr.mxu0 0.0
    %135 = vmatpush1.msra.mxu0 0.0
    %136 = vmatprep.subr.mxu0 0.0
    %137 = vmatpush1.msra.mxu0 0.0
    %138 = vmatprep.subr.mxu0 0.0
    %139 = vmatpush1.msra.mxu0 0.0
    %140 = vmatprep.subr.mxu0 0.0
    %141 = vmatpush1.msra.mxu0 0.0
    %142 = vmatprep.subr.mxu0 0.0
    %143 = vmatpush1.msra.mxu0 0.0
    %144 = vmatprep.subr.mxu0 0.0
    %145 = vmatpush1.msra.mxu0 0.0
    %146 = vmatprep.subr.mxu0 0.0
    %147 = vmatpush1.msra.mxu0 0.0
    %148 = vmatprep.subr.mxu0 0.0
    %149 = vmatpush1.msra.mxu0 0.0
    %150 = vmatprep.subr.mxu0 0.0
    %151 = vmatpush1.msra.mxu0 0.0
    %152 = vmatprep.subr.mxu0 0.0
    %153 = vmatpush1.msra.mxu0 0.0
    %154 = vmatprep.subr.mxu0 0.0
    %155 = vmatpush1.msra.mxu0 0.0
    %156 = vmatprep.subr.mxu0 0.0
    %157 = vmatpush1.msra.mxu0 0.0
    %158 = vmatprep.subr.mxu0 0.0
    %159 = vmatpush1.msra.mxu0 0.0
    %160 = vmatprep.subr.mxu0 0.0
    %161 = vmatpush1.msra.mxu0 0.0
    %162 = vmatprep.subr.mxu0 0.0
    %163 = vmatpush1.msra.mxu0 0.0
    %164 = vmatprep.subr.mxu0 0.0
    %165 = vmatpush1.msra.mxu0 0.0
    %166 = vmatprep.subr.mxu0 0.0
    %167 = vmatpush1.msra.mxu0 0.0
    %168 = vmatprep.subr.mxu0 0.0
    %169 = vmatpush1.msra.mxu0 0.0
    %170 = vmatprep.subr.mxu0 0.0
    %171 = vmatpush1.msra.mxu0 0.0
    %172 = vmatprep.subr.mxu0 0.0
    %173 = vmatpush1.msra.mxu0 0.0
    %174 = vmatprep.subr.mxu0 0.0
    %175 = vmatpush1.msra.mxu0 0.0
    %176 = vmatprep.subr.mxu0 0.0
    %177 = vmatpush1.msra.mxu0 0.0
    %178 = vmatprep.subr.mxu0 0.0
    %179 = vmatpush1.msra.mxu0 0.0
    %180 = vmatprep.subr.mxu0 0.0
    %181 = vmatpush1.msra.mxu0 0.0
    %182 = vmatprep.mubr.f32.mxu0 0.0
    %183 = vmatmul.mubr.f32.gmra.mrb[0].mxu0 %v71
    %v184 = vpop.f32.mrb[0].mxu0
    %v185 = vadd.f32 %v52, %v184
    %v186 = vpop.f32.mrb[0].mxu0
    %v187 = vadd.f32 %v56, %v186
    %188 = vmatprep.mubr.f32.mxu0 0.0
    %189 = vmatmul.mubr.f32.gmra.mrb[0].mxu0 %v74
    %v190 = vpop.f32.mrb[0].mxu0
    %v191 = vadd.f32 %v52, %v190
    %v192 = vpop.f32.mrb[0].mxu0
    %v193 = vadd.f32 %v56, %v192
    %194 = vmatprep.mubr.f32.mxu0 0.0
    %195 = vmatmul.mubr.f32.gmra.mrb[0].mxu0 %v77
    %v196 = vpop.f32.mrb[0].mxu0
    %v197 = vadd.f32 %v52, %v196
    %v198 = vpop.f32.mrb[0].mxu0
    %v199 = vadd.f32 %v56, %v198
    %200 = vmatprep.mubr.f32.mxu0 0.0
    %201 = vmatmul.mubr.f32.gmra.mrb[0].mxu0 %v80
    %v202 = vpop.f32.mrb[0].mxu0
    %v203 = vadd.f32 %v52, %v202
    %v204 = vpop.f32.mrb[0].mxu0
    %v205 = vadd.f32 %v56, %v204
    %206 = vmatprep.mubr.f32.mxu0 0.0
    %207 = vmatmul.mubr.f32.gmra.mrb[0].mxu0 %v83
    %v208 = vpop.f32.mrb[0].mxu0
    %v209 = vadd.f32 %v52, %v208
    %v210 = vpop.f32.mrb[0].mxu0
    %v211 = vadd.f32 %v56, %v210
    %212 = vmatprep.mubr.f32.mxu0 0.0
    %213 = vmatmul.mubr.f32.gmra.mrb[0].mxu0 %v86
    %v214 = vpop.f32.mrb[0].mxu0
    %v215 = vadd.f32 %v52, %v214
    %v216 = vpop.f32.mrb[0].mxu0
    %v217 = vadd.f32 %v56, %v216
    %218 = vmatprep.mubr.f32.mxu0 0.0
    %219 = vmatmul.mubr.f32.gmra.mrb[0].mxu0 %v89
    %v220 = vpop.f32.mrb[0].mxu0
    %v221 = vadd.f32 %v52, %v220
    %v222 = vpop.f32.mrb[0].mxu0
    %v223 = vadd.f32 %v56, %v222
    %224 = vmatprep.mubr.f32.mxu0 0.0
    %225 = vmatmul.mubr.f32.gmra.mrb[0].mxu0 %v92
    %v226 = vpop.f32.mrb[0].mxu0
    %v227 = vadd.f32 %v52, %v226
    %v228 = vpop.f32.mrb[0].mxu0
    %v229 = vadd.f32 %v56, %v228
    %230 = vmatprep.mubr.f32.mxu0 0.0
    %231 = vmatmul.mubr.f32.gmra.mrb[0].mxu0 %v95
    %v232 = vpop.f32.mrb[0].mxu0
    %v233 = vadd.f32 %v52, %v232
    %v234 = vpop.f32.mrb[0].mxu0
    %v235 = vadd.f32 %v56, %v234
    %236 = vmatprep.mubr.f32.mxu0 0.0
    %237 = vmatmul.mubr.f32.gmra.mrb[0].mxu0 %v98
    %v238 = vpop.f32.mrb[0].mxu0
    %v239 = vadd.f32 %v52, %v238
    %v240 = vpop.f32.mrb[0].mxu0
    %v241 = vadd.f32 %v56, %v240
    %242 = vmatprep.mubr.f32.mxu0 0.0
    %243 = vmatmul.mubr.f32.gmra.mrb[0].mxu0 %v101
    %v244 = vpop.f32.mrb[0].mxu0
    %v245 = vadd.f32 %v52, %v244
    %v246 = vpop.f32.mrb[0].mxu0
    %v247 = vadd.f32 %v56, %v246
    %248 = vmatprep.mubr.f32.mxu0 0.0
    %249 = vmatmul.mubr.f32.gmra.mrb[0].mxu0 %v104
    %v250 = vpop.f32.mrb[0].mxu0
    %v251 = vadd.f32 %v52, %v250
    %v252 = vpop.f32.mrb[0].mxu0
    %v253 = vadd.f32 %v56, %v252
    %254 = vmatprep.mubr.f32.mxu0 0.0
    %255 = vmatmul.mubr.f32.gmra.mrb[0].mxu0 %v107
    %v256 = vpop.f32.mrb[0].mxu0
    %v257 = vadd.f32 %v52, %v256
    %v258 = vpop.f32.mrb[0].mxu0
    %v259 = vadd.f32 %v56, %v258
    %260 = vmatprep.mubr.f32.mxu0 0.0
    %261 = vmatmul.mubr.f32.gmra.mrb[0].mxu0 %v110
    %v262 = vpop.f32.mrb[0].mxu0
    %v263 = vadd.f32 %v52, %v262
    %v264 = vpop.f32.mrb[0].mxu0
    %v265 = vadd.f32 %v56, %v264
    %266 = vmatprep.mubr.f32.mxu0 0.0
    %267 = vmatmul.mubr.f32.gmra.mrb[0].mxu0 %v113
    %v268 = vpop.f32.mrb[0].mxu0
    %v269 = vadd.f32 %v52, %v268
    %v270 = vpop.f32.mrb[0].mxu0
    %v271 = vadd.f32 %v56, %v270
    %272 = vmatprep.mubr.f32.mxu0 0.0
    %273 = vmatmul.mubr.f32.gmra.mrb[0].mxu0 %v116
    %v274 = vpop.f32.mrb[0].mxu0
    %v275 = vadd.f32 %v52, %v274
    %v276 = vpop.f32.mrb[0].mxu0
    %v277 = vadd.f32 %v56, %v276
    %278 = vdwg.mxu0
    %279 = vmatprep.subr.mxu0 %v34
    %280 = vmatpush1.msra.mxu0 %v33
    %281 = vmatprep.subr.mxu0 %v38
    %282 = vmatpush1.msra.mxu0 %v37
    %283 = vmatprep.subr.mxu0 %v42
    %284 = vmatpush1.msra.mxu0 %v41
    %285 = vmatprep.subr.mxu0 %v46
    %286 = vmatpush1.msra.mxu0 %v45
    %287 = vmatprep.subr.mxu0 0.0
    %288 = vmatpush1.msra.mxu0 0.0
    %289 = vmatprep.subr.mxu0 0.0
    %290 = vmatpush1.msra.mxu0 0.0
    %291 = vmatprep.subr.mxu0 0.0
    %292 = vmatpush1.msra.mxu0 0.0
    %293 = vmatprep.subr.mxu0 0.0
    %294 = vmatpush1.msra.mxu0 0.0
    %295 = vmatprep.subr.mxu0 0.0
    %296 = vmatpush1.msra.mxu0 0.0
    %297 = vmatprep.subr.mxu0 0.0
    %298 = vmatpush1.msra.mxu0 0.0
    %299 = vmatprep.subr.mxu0 0.0
    %300 = vmatpush1.msra.mxu0 0.0
    %301 = vmatprep.subr.mxu0 0.0
    %302 = vmatpush1.msra.mxu0 0.0
    %303 = vmatprep.subr.mxu0 0.0
    %304 = vmatpush1.msra.mxu0 0.0
    %305 = vmatprep.subr.mxu0 0.0
    %306 = vmatpush1.msra.mxu0 0.0
    %307 = vmatprep.subr.mxu0 0.0
    %308 = vmatpush1.msra.mxu0 0.0
    %309 = vmatprep.subr.mxu0 0.0
    %310 = vmatpush1.msra.mxu0 0.0
    %311 = vmatprep.subr.mxu0 0.0
    %312 = vmatpush1.msra.mxu0 0.0
    %313 = vmatprep.subr.mxu0 0.0
    %314 = vmatpush1.msra.mxu0 0.0
    %315 = vmatprep.subr.mxu0 0.0
    %316 = vmatpush1.msra.mxu0 0.0
    %317 = vmatprep.subr.mxu0 0.0
    %318 = vmatpush1.msra.mxu0 0.0
    %319 = vmatprep.subr.mxu0 0.0
    %320 = vmatpush1.msra.mxu0 0.0
    %321 = vmatprep.subr.mxu0 0.0
    %322 = vmatpush1.msra.mxu0 0.0
    %323 = vmatprep.subr.mxu0 0.0
    %324 = vmatpush1.msra.mxu0 0.0
    %325 = vmatprep.subr.mxu0 0.0
    %326 = vmatpush1.msra.mxu0 0.0
    %327 = vmatprep.subr.mxu0 0.0
    %328 = vmatpush1.msra.mxu0 0.0
    %329 = vmatprep.subr.mxu0 0.0
    %330 = vmatpush1.msra.mxu0 0.0
    %331 = vmatprep.subr.mxu0 0.0
    %332 = vmatpush1.msra.mxu0 0.0
    %333 = vmatprep.subr.mxu0 0.0
    %334 = vmatpush1.msra.mxu0 0.0
    %335 = vmatprep.subr.mxu0 0.0
    %336 = vmatpush1.msra.mxu0 0.0
    %337 = vmatprep.subr.mxu0 0.0
    %338 = vmatpush1.msra.mxu0 0.0
    %339 = vmatprep.subr.mxu0 0.0
    %340 = vmatpush1.msra.mxu0 0.0
    %341 = vmatprep.subr.mxu0 0.0
    %342 = vmatpush1.msra.mxu0 0.0
    %343 = vmatprep.mubr.f32.mxu0 0.0
    %344 = vmatmul.mubr.f32.gmra.mrb[0].mxu0 %v71
    %v345 = vpop.f32.mrb[0].mxu0
    %v346 = vadd.f32 %v60, %v345
    %v347 = vpop.f32.mrb[0].mxu0
    %v348 = vadd.f32 %v64, %v347
    %349 = vmatprep.mubr.f32.mxu0 0.0
    %350 = vmatmul.mubr.f32.gmra.mrb[0].mxu0 %v74
    %v351 = vpop.f32.mrb[0].mxu0
    %v352 = vadd.f32 %v60, %v351
    %v353 = vpop.f32.mrb[0].mxu0
    %v354 = vadd.f32 %v64, %v353
    %355 = vmatprep.mubr.f32.mxu0 0.0
    %356 = vmatmul.mubr.f32.gmra.mrb[0].mxu0 %v77
    %v357 = vpop.f32.mrb[0].mxu0
    %v358 = vadd.f32 %v60, %v357
    %v359 = vpop.f32.mrb[0].mxu0
    %v360 = vadd.f32 %v64, %v359
    %361 = vmatprep.mubr.f32.mxu0 0.0
    %362 = vmatmul.mubr.f32.gmra.mrb[0].mxu0 %v80
    %v363 = vpop.f32.mrb[0].mxu0
    %v364 = vadd.f32 %v60, %v363
    %v365 = vpop.f32.mrb[0].mxu0
    %v366 = vadd.f32 %v64, %v365
    %367 = vmatprep.mubr.f32.mxu0 0.0
    %368 = vmatmul.mubr.f32.gmra.mrb[0].mxu0 %v83
    %v369 = vpop.f32.mrb[0].mxu0
    %v370 = vadd.f32 %v60, %v369
    %v371 = vpop.f32.mrb[0].mxu0
    %v372 = vadd.f32 %v64, %v371
    %373 = vmatprep.mubr.f32.mxu0 0.0
    %374 = vmatmul.mubr.f32.gmra.mrb[0].mxu0 %v86
    %v375 = vpop.f32.mrb[0].mxu0
    %v376 = vadd.f32 %v60, %v375
    %v377 = vpop.f32.mrb[0].mxu0
    %v378 = vadd.f32 %v64, %v377
    %379 = vmatprep.mubr.f32.mxu0 0.0
    %380 = vmatmul.mubr.f32.gmra.mrb[0].mxu0 %v89
    %v381 = vpop.f32.mrb[0].mxu0
    %v382 = vadd.f32 %v60, %v381
    %v383 = vpop.f32.mrb[0].mxu0
    %v384 = vadd.f32 %v64, %v383
    %385 = vmatprep.mubr.f32.mxu0 0.0
    %386 = vmatmul.mubr.f32.gmra.mrb[0].mxu0 %v92
    %v387 = vpop.f32.mrb[0].mxu0
    %v388 = vadd.f32 %v60, %v387
    %v389 = vpop.f32.mrb[0].mxu0
    %v390 = vadd.f32 %v64, %v389
    %391 = vmatprep.mubr.f32.mxu0 0.0
    %392 = vmatmul.mubr.f32.gmra.mrb[0].mxu0 %v95
    %v393 = vpop.f32.mrb[0].mxu0
    %v394 = vadd.f32 %v60, %v393
    %v395 = vpop.f32.mrb[0].mxu0
    %v396 = vadd.f32 %v64, %v395
    %397 = vmatprep.mubr.f32.mxu0 0.0
    %398 = vmatmul.mubr.f32.gmra.mrb[0].mxu0 %v98
    %v399 = vpop.f32.mrb[0].mxu0
    %v400 = vadd.f32 %v60, %v399
    %v401 = vpop.f32.mrb[0].mxu0
    %v402 = vadd.f32 %v64, %v401
    %403 = vmatprep.mubr.f32.mxu0 0.0
    %404 = vmatmul.mubr.f32.gmra.mrb[0].mxu0 %v101
    %v405 = vpop.f32.mrb[0].mxu0
    %v406 = vadd.f32 %v60, %v405
    %v407 = vpop.f32.mrb[0].mxu0
    %v408 = vadd.f32 %v64, %v407
    %409 = vmatprep.mubr.f32.mxu0 0.0
    %410 = vmatmul.mubr.f32.gmra.mrb[0].mxu0 %v104
    %v411 = vpop.f32.mrb[0].mxu0
    %v412 = vadd.f32 %v60, %v411
    %v413 = vpop.f32.mrb[0].mxu0
    %v414 = vadd.f32 %v64, %v413
    %415 = vmatprep.mubr.f32.mxu0 0.0
    %416 = vmatmul.mubr.f32.gmra.mrb[0].mxu0 %v107
    %v417 = vpop.f32.mrb[0].mxu0
    %v418 = vadd.f32 %v60, %v417
    %v419 = vpop.f32.mrb[0].mxu0
    %v420 = vadd.f32 %v64, %v419
    %421 = vmatprep.mubr.f32.mxu0 0.0
    %422 = vmatmul.mubr.f32.gmra.mrb[0].mxu0 %v110
    %v423 = vpop.f32.mrb[0].mxu0
    %v424 = vadd.f32 %v60, %v423
    %v425 = vpop.f32.mrb[0].mxu0
    %v426 = vadd.f32 %v64, %v425
    %427 = vmatprep.mubr.f32.mxu0 0.0
    %428 = vmatmul.mubr.f32.gmra.mrb[0].mxu0 %v113
    %v429 = vpop.f32.mrb[0].mxu0
    %v430 = vadd.f32 %v60, %v429
    %v431 = vpop.f32.mrb[0].mxu0
    %v432 = vadd.f32 %v64, %v431
    %433 = vmatprep.mubr.f32.mxu0 0.0
    %434 = vmatmul.mubr.f32.gmra.mrb[0].mxu0 %v116
    %v435 = vpop.f32.mrb[0].mxu0
    %v436 = vadd.f32 %v60, %v435
    %v437 = vpop.f32.mrb[0].mxu0
    %v438 = vadd.f32 %v64, %v437
    %439 = vdwg.mxu0
    %440 = vst [vmem:[#allocation2] sm:$0xff] %v185
    %441 = vst [vmem:[#allocation2 + $0x8] sm:$0xff] %v187
    %442 = vst [vmem:[#allocation2 + $0x10] sm:$0xff] %v346
    %443 = vst [vmem:[#allocation2 + $0x18] sm:$0xff] %v348
    %444 = vst [vmem:[#allocation2 + $0x20] sm:$0xff] %v191
    %445 = vst [vmem:[#allocation2 + $0x28] sm:$0xff] %v193
    %446 = vst [vmem:[#allocation2 + $0x30] sm:$0xff] %v352
    %447 = vst [vmem:[#allocation2 + $0x38] sm:$0xff] %v354
    %448 = vst [vmem:[#allocation2 + $0x40] sm:$0xff] %v197
    %449 = vst [vmem:[#allocation2 + $0x48] sm:$0xff] %v199
    %450 = vst [vmem:[#allocation2 + $0x50] sm:$0xff] %v358
    %451 = vst [vmem:[#allocation2 + $0x58] sm:$0xff] %v360
    %452 = vst [vmem:[#allocation2 + $0x60] sm:$0xff] %v203
    %453 = vst [vmem:[#allocation2 + $0x68] sm:$0xff] %v205
    %454 = vst [vmem:[#allocation2 + $0x70] sm:$0xff] %v364
    %455 = vst [vmem:[#allocation2 + $0x78] sm:$0xff] %v366
    %456 = vst [vmem:[#allocation2 + $0x80] sm:$0xff] %v209
    %457 = vst [vmem:[#allocation2 + $0x88] sm:$0xff] %v211
    %458 = vst [vmem:[#allocation2 + $0x90] sm:$0xff] %v370
    %459 = vst [vmem:[#allocation2 + $0x98] sm:$0xff] %v372
    %460 = vst [vmem:[#allocation2 + $0xa0] sm:$0xff] %v215
    %461 = vst [vmem:[#allocation2 + $0xa8] sm:$0xff] %v217
    %462 = vst [vmem:[#allocation2 + $0xb0] sm:$0xff] %v376
    %463 = vst [vmem:[#allocation2 + $0xb8] sm:$0xff] %v378
    %464 = vst [vmem:[#allocation2 + $0xc0] sm:$0xff] %v221
    %465 = vst [vmem:[#allocation2 + $0xc8] sm:$0xff] %v223
    %466 = vst [vmem:[#allocation2 + $0xd0] sm:$0xff] %v382
    %467 = vst [vmem:[#allocation2 + $0xd8] sm:$0xff] %v384
    %468 = vst [vmem:[#allocation2 + $0xe0] sm:$0xff] %v227
    %469 = vst [vmem:[#allocation2 + $0xe8] sm:$0xff] %v229
    %470 = vst [vmem:[#allocation2 + $0xf0] sm:$0xff] %v388
    %471 = vst [vmem:[#allocation2 + $0xf8] sm:$0xff] %v390
    %472 = vst [vmem:[#allocation2 + $0x100] sm:$0xff] %v233
    %473 = vst [vmem:[#allocation2 + $0x108] sm:$0xff] %v235
    %474 = vst [vmem:[#allocation2 + $0x110] sm:$0xff] %v394
    %475 = vst [vmem:[#allocation2 + $0x118] sm:$0xff] %v396
    %476 = vst [vmem:[#allocation2 + $0x120] sm:$0xff] %v239
    %477 = vst [vmem:[#allocation2 + $0x128] sm:$0xff] %v241
    %478 = vst [vmem:[#allocation2 + $0x130] sm:$0xff] %v400
    %479 = vst [vmem:[#allocation2 + $0x138] sm:$0xff] %v402
    %480 = vst [vmem:[#allocation2 + $0x140] sm:$0xff] %v245
    %481 = vst [vmem:[#allocation2 + $0x148] sm:$0xff] %v247
    %482 = vst [vmem:[#allocation2 + $0x150] sm:$0xff] %v406
    %483 = vst [vmem:[#allocation2 + $0x158] sm:$0xff] %v408
    %484 = vst [vmem:[#allocation2 + $0x160] sm:$0xff] %v251
    %485 = vst [vmem:[#allocation2 + $0x168] sm:$0xff] %v253
    %486 = vst [vmem:[#allocation2 + $0x170] sm:$0xff] %v412
    %487 = vst [vmem:[#allocation2 + $0x178] sm:$0xff] %v414
    %488 = vst [vmem:[#allocation2 + $0x180] sm:$0xff] %v257
    %489 = vst [vmem:[#allocation2 + $0x188] sm:$0xff] %v259
    %490 = vst [vmem:[#allocation2 + $0x190] sm:$0xff] %v418
    %491 = vst [vmem:[#allocation2 + $0x198] sm:$0xff] %v420
    %492 = vst [vmem:[#allocation2 + $0x1a0] sm:$0xff] %v263
    %493 = vst [vmem:[#allocation2 + $0x1a8] sm:$0xff] %v265
    %494 = vst [vmem:[#allocation2 + $0x1b0] sm:$0xff] %v424
    %495 = vst [vmem:[#allocation2 + $0x1b8] sm:$0xff] %v426
    %496 = vst [vmem:[#allocation2 + $0x1c0] sm:$0xff] %v269
    %497 = vst [vmem:[#allocation2 + $0x1c8] sm:$0xff] %v271
    %498 = vst [vmem:[#allocation2 + $0x1d0] sm:$0xff] %v430
    %499 = vst [vmem:[#allocation2 + $0x1d8] sm:$0xff] %v432
    %500 = vst [vmem:[#allocation2 + $0x1e0] sm:$0xff] %v275
    %501 = vst [vmem:[#allocation2 + $0x1e8] sm:$0xff] %v277
    %502 = vst [vmem:[#allocation2 + $0x1f0] sm:$0xff] %v436
    %503 = vst [vmem:[#allocation2 + $0x1f8] sm:$0xff] %v438
    // Predicated region
    $region14: #{tpu_custom_call.1} parent=1 // pred_check
      _
    $region15: #{tpu_custom_call.1} parent=1 // pred_check_branch
      %505 = sbr.rel (0) target = $region17
    $region16: #{tpu_custom_call.1} parent=1 // pred_region
      %s507 = ssub.s32 8192, 8192
      %508 = vsyncadd [#allocation3], %s507
      %s509 = sshll.u32 [#allocation2], 4
      %s510 = int_to_ptr.vmem [resolvable:$true] %s509
      %515 = dma.vmem_to_hbm [thread:$0]  %s510, 8192, %s3, [#allocation3], 512, 512, 32
    $region17: #{tpu_custom_call.1} parent=1 // pred_fallthru
      _
    // Predicated region
    $region18: #{tpu_custom_call.1} parent=1 // pred_check
      _
    $region19: #{tpu_custom_call.1} parent=1 // pred_check_branch
      %517 = sbr.rel (0) target = $region21
    $region20: #{tpu_custom_call.1} parent=1 // pred_region
      %518 = dma.done [#allocation3], 8192
    $region21: #{tpu_custom_call.1} parent=1 // pred_fallthru
      _
    %519 = vsyncpa [#allocation3], 1

</llo_original>
